<compile_context>
chip_gen: v5e
topology: v5e:2x2
jax: 0.10.0
libtpu: 0.0.40
codegen_flags: <defaults>
</compile_context>

<pallas_src>
import jax
import jax.numpy as jnp
from jax import lax
from jax.experimental import pallas as pl
from jax.experimental.pallas import tpu as pltpu

_LANE = 128
_SUBLANE = 8
_EPS = 1e-12  # F.normalize default eps


def _round_up(v, m):
    return ((v + m - 1) // m) * m


def prepare_weight(weight, dtype=None, lane=_LANE):
    """One-time (outside the hot path) weight prep.

    weight: (C, D) nn.Linear layout -> (D, C_pad), C padded up to a multiple of
    128 with zero columns so the kernel output is lane-dense and the MXU sees a
    full-width N.  Optionally cast (e.g. to bf16 for the mxu_bf16 fast path).
    Call once per parameter update, not per forward.
    """
    C, D = weight.shape
    C_pad = max(lane, _round_up(C, lane))
    wt = weight.T  # (D, C)
    if dtype is not None:
        wt = wt.astype(dtype)
    if C_pad != C:
        wt = jnp.pad(wt, ((0, 0), (0, C_pad - C)))
    return wt  # (D, C_pad)


def _make_kernel(inv_temp: float, normalize: bool, mxu_bf16: bool):
    def kernel(x_ref, wt_ref, o_ref):
        x = x_ref[...]
        if mxu_bf16:
            xm = x.astype(jnp.bfloat16)
            wm = wt_ref[...].astype(jnp.bfloat16)  # no-op if weight prepared in bf16
        else:
            xm = x
            wm = wt_ref[...]
        # f32 accumulation on the MXU regardless of operand dtype.
        logits = jnp.dot(xm, wm, preferred_element_type=jnp.float32)
        if normalize:
            # Scale the accumulator, not the input:  (x*r) @ W == r * (x @ W).
            # Norm math always in f32 (v5e has no bf16 VPU).
            xf = x.astype(jnp.float32)
            sq = jnp.sum(xf * xf, axis=-1, keepdims=True)
            # x / max(||x||, eps)  ==  x * rsqrt(max(||x||^2, eps^2))
            scale = lax.rsqrt(jnp.maximum(sq, _EPS * _EPS)) * inv_temp
            logits = logits * scale
        elif inv_temp != 1.0:
            logits = logits * inv_temp
        o_ref[...] = logits.astype(o_ref.dtype)

    return kernel


def _choose_tiles(B, D, C_pad, x_bytes, w_bytes, o_bytes, tile_b, tile_c):
    """Budget-driven tile selection (generation-safe).

    Working set per core:
      2 * tile_b * D * x_bytes            (double-buffered activations)
      w_bufs * D * tile_c * w_bytes       (weight: 1 buf if resident, 2 if streamed)
      2 * tile_b * tile_c * o_bytes       (double-buffered output)
    Budget capped well under v7x's 64 MiB physical VMEM per TensorCore.
    """
    VMEM_BUDGET = 48 << 20      # per-core working-set cap (safe on v5e/v6e/v7x)
    WEIGHT_TARGET = 24 << 20    # max bytes for a VMEM-resident weight block

    if tile_c is None:
        if D * C_pad * w_bytes <= WEIGHT_TARGET:
            tile_c = C_pad
        else:
            # Stream the weight over class tiles (double-buffered).
            tile_c = (WEIGHT_TARGET // (2 * D * w_bytes) // _LANE) * _LANE
            tile_c = max(_LANE, tile_c)
    tile_c = int(min(max(_LANE, _round_up(int(tile_c), _LANE)), C_pad))
    n_c = pl.cdiv(C_pad, tile_c)
    w_bufs = 1 if n_c == 1 else 2
    w_vmem = w_bufs * D * tile_c * w_bytes

    if tile_b is None:
        per_row = 2 * D * x_bytes + 2 * tile_c * o_bytes
        avail = max(VMEM_BUDGET - w_vmem, _SUBLANE * per_row)
        tile_b = (avail // per_row // _SUBLANE) * _SUBLANE
        tile_b = int(min(512, max(_SUBLANE, tile_b)))
    if tile_b >= B:
        tile_b = B  # full-extent block: (8,128) constraint is satisfied trivially
    else:
        tile_b = max(_SUBLANE, (int(tile_b) // _SUBLANE) * _SUBLANE)

    working = (2 * tile_b * D * x_bytes + w_vmem + 2 * tile_b * tile_c * o_bytes)
    vmem_limit = int(min(max(int(working * 1.5) + (2 << 20), 32 << 20), 56 << 20))
    return int(tile_b), int(tile_c), w_bufs, vmem_limit


def res_classifier_mme_forward(x, wt_prepared, num_classes, *, temp=0.05,
                               norm=True, return_feat=False, out_dtype=None,
                               mxu_bf16=False, tile_b=None, tile_c=None):
    """Pallas implementation of ResClassifier_MME.forward.

    x:           (B, D) float array
    wt_prepared: (D, C_pad) array from prepare_weight()  (prepared once)
    num_classes: original C (padded columns are sliced off the result)
    """
    if return_feat:
        return x
    # TODO(synk): `dropout` flag of the PyTorch forward is unused there (no
    # dropout layer is applied), so it is intentionally not modeled here.

    B, D = x.shape
    Dw, C_pad = wt_prepared.shape
    assert Dw == D, "prepared weight feature dim mismatch"
    assert C_pad % _LANE == 0, "use prepare_weight() to lane-pad the classes"

    out_dtype = x.dtype if out_dtype is None else out_dtype
    x_bytes = jnp.dtype(x.dtype).itemsize
    w_bytes = jnp.dtype(wt_prepared.dtype).itemsize
    o_bytes = jnp.dtype(out_dtype).itemsize

    tile_b, tile_c, w_bufs, vmem_limit = _choose_tiles(
        B, D, C_pad, x_bytes, w_bytes, o_bytes, tile_b, tile_c)
    n_b = pl.cdiv(B, tile_b)
    n_c = pl.cdiv(C_pad, tile_c)

    inv_temp = (1.0 / temp) if norm else 1.0
    kernel = _make_kernel(inv_temp, normalize=norm, mxu_bf16=mxu_bf16)

    # Advisory only: per-operand itemsizes, weight counted once (resident).
    cost = pl.CostEstimate(
        flops=2 * B * D * C_pad,
        transcendentals=B if norm else 0,
        bytes_accessed=B * D * x_bytes + D * C_pad * w_bytes + B * C_pad * o_bytes,
    )

    def build(single_buffer_weight):
        if single_buffer_weight:
            # Constant index_map -> no re-DMA; single buffer halves its VMEM use.
            w_spec = pl.BlockSpec((D, tile_c), lambda i, j: (0, j),
                                  pipeline_mode=pl.Buffered(1))
        else:
            w_spec = pl.BlockSpec((D, tile_c), lambda i, j: (0, j))
        return pl.pallas_call(
            kernel,
            out_shape=jax.ShapeDtypeStruct((B, C_pad), out_dtype),
            grid_spec=pltpu.PrefetchScalarGridSpec(
                num_scalar_prefetch=0,
                grid=(n_b, n_c),
                in_specs=[
                    # x: streamed / double-buffered over the batch; block index
                    # is constant across the (fast) class axis -> no re-DMA.
                    pl.BlockSpec((tile_b, D), lambda i, j: (i, 0)),
                    w_spec,
                ],
                out_specs=pl.BlockSpec((tile_b, tile_c), lambda i, j: (i, j)),
            ),
            compiler_params=pltpu.CompilerParams(
                # independent output tiles on both axes -> megacore sharding.
                dimension_semantics=("parallel", "parallel"),
                vmem_limit_bytes=vmem_limit),
            cost_estimate=cost,
        )

    want_single = (n_c == 1 and w_bufs == 1)
    try:
        out = build(want_single)(x, wt_prepared)
    except Exception:
        if not want_single:
            raise
        # Fallback if this jax build rejects Buffered(1) single-buffering.
        out = build(False)(x, wt_prepared)

    # Drop zero-padded classes only when padding was actually added.
    if C_pad == num_classes:
        return out
    return out[:, :num_classes]


def reference_forward(x, weight, temp=0.05, norm=True):
    """Pure-JAX reference matching the PyTorch forward."""
    if norm:
        n = jnp.sqrt(jnp.sum(x * x, axis=1, keepdims=True))
        xn = x / jnp.maximum(n, _EPS)
        return (xn @ weight.T) / temp
    return x @ weight.T


if __name__ == "__main__":
    key = jax.random.PRNGKey(0)
    kx, kw, kx2, kw2 = jax.random.split(key, 4)
    temp = 0.05

    # Case 1: small, module-consistent shapes; single class tile
    # (VMEM-resident, single-buffered weight path).
    B, D, C = 8, 256, 16
    x = jax.random.normal(kx, (B, D), dtype=jnp.float32)
    # weights_init(): normal(0.0, 0.1), deterministic here via PRNG key.
    weight = 0.1 * jax.random.normal(kw, (C, D), dtype=jnp.float32)
    wt_prepared = prepare_weight(weight)  # prepared once, outside the hot path

    out = jax.block_until_ready(
        res_classifier_mme_forward(x, wt_prepared, C, temp=temp, norm=True))
    ref = reference_forward(x, weight, temp=temp, norm=True)
    assert out.shape == (B, C)
    assert jnp.allclose(out, ref, atol=1e-4, rtol=1e-4), "norm=True mismatch"

    out_nn = jax.block_until_ready(
        res_classifier_mme_forward(x, wt_prepared, C, temp=temp, norm=False))
    ref_nn = reference_forward(x, weight, temp=temp, norm=False)
    assert jnp.allclose(out_nn, ref_nn, atol=1e-4, rtol=1e-4), "norm=False mismatch"

    # Case 2: exercise the 2-D (batch-tile, class-tile) grid with forced small
    # tiles and non-multiple-of-128 classes (padded columns sliced off).
    B2, D2, C2 = 24, 256, 200
    x2 = jax.random.normal(kx2, (B2, D2), dtype=jnp.float32)
    w2 = 0.1 * jax.random.normal(kw2, (C2, D2), dtype=jnp.float32)
    wt2 = prepare_weight(w2)  # C_pad = 256
    out2 = jax.block_until_ready(
        res_classifier_mme_forward(x2, wt2, C2, temp=temp, norm=True,
                                   tile_b=8, tile_c=128))
    ref2 = reference_forward(x2, w2, temp=temp, norm=True)
    assert out2.shape == (B2, C2)
    assert jnp.allclose(out2, ref2, atol=1e-4, rtol=1e-4), "2-D grid mismatch"

    print("KERNEL_OK")
</pallas_src>

<mosaic_0001>
module attributes {stable_mosaic.version = 11 : i64} {
  func.func @kernel(%arg0: i32, %arg1: i32, %arg2: memref<8x256xf32, #tpu.memory_space<vmem>>, %arg3: memref<256x128xf32, #tpu.memory_space<vmem>>, %arg4: memref<8x128xf32, #tpu.memory_space<vmem>>) attributes {dimension_semantics = [#tpu.dimension_semantics<parallel>, #tpu.dimension_semantics<parallel>], iteration_bounds = array<i64: 1, 1>, scalar_prefetch = 0 : i64, scratch_operands = 0 : i64, tpu.core_type = #tpu.core_type<tc>, window_params = [{transform_indices = @transform_0, window_bounds = array<i64: 8, 256>}, {pipeline_mode = #tpu.pipeline_mode<synchronous>, transform_indices = @transform_1, window_bounds = array<i64: 256, 128>}, {transform_indices = @transform_2, window_bounds = array<i64: 8, 128>}]} {
    %c0 = arith.constant 0 : index
    %c0_0 = arith.constant 0 : index
    %0 = vector.load %arg2[%c0, %c0_0] : memref<8x256xf32, #tpu.memory_space<vmem>>, vector<8x256xf32>
    %c0_1 = arith.constant 0 : index
    %c0_2 = arith.constant 0 : index
    %1 = vector.load %arg3[%c0_1, %c0_2] : memref<256x128xf32, #tpu.memory_space<vmem>>, vector<256x128xf32>
    %cst = arith.constant dense<0.000000e+00> : vector<8x128xf32>
    %2 = tpu.matmul %0, %1, %cst {dimension_numbers = #tpu.dot_dimension_numbers<[1], [0], [0], [1], [0, 0, 1, 1], [], []>} : vector<8x256xf32>, vector<256x128xf32>, vector<8x128xf32> -> vector<8x128xf32>
    %3 = arith.mulf %0, %0 : vector<8x256xf32>
    %cst_3 = arith.constant dense<0.000000e+00> : vector<8xf32>
    %4 = vector.multi_reduction <add>, %3, %cst_3 [1] : vector<8x256xf32> to vector<8xf32>
    %5 = vector.shape_cast %4 : vector<8xf32> to vector<8x1xf32>
    %cst_4 = arith.constant 1.000000e-24 : f32
    %6 = vector.broadcast %cst_4 : f32 to vector<8x1xf32>
    %7 = arith.maximumf %5, %6 : vector<8x1xf32>
    %8 = math.rsqrt %7 : vector<8x1xf32>
    %cst_5 = arith.constant 2.000000e+01 : f32
    %9 = vector.broadcast %cst_5 : f32 to vector<8x1xf32>
    %10 = arith.mulf %8, %9 : vector<8x1xf32>
    %11 = vector.broadcast %10 : vector<8x1xf32> to vector<8x128xf32>
    %12 = arith.mulf %2, %11 : vector<8x128xf32>
    %c0_6 = arith.constant 0 : index
    %c0_7 = arith.constant 0 : index
    %13 = vector.load %arg4[%c0_6, %c0_7] : memref<8x128xf32, #tpu.memory_space<vmem>>, vector<8x128xf32>
    tpu.vector_store %arg4[%c0_6, %c0_7], %12 {strides = array<i32>} : memref<8x128xf32, #tpu.memory_space<vmem>>, vector<8x128xf32>,
    return
  }
  func.func @transform_0(%arg0: i32, %arg1: i32) -> (i32, i32) {
    %c0_i32 = arith.constant 0 : i32
    %c0_i32_0 = arith.constant 0 : i32
    return %arg0, %c0_i32 : i32, i32
  }
  func.func @transform_1(%arg0: i32, %arg1: i32) -> (i32, i32) {
    %c0_i32 = arith.constant 0 : i32
    %c0_i32_0 = arith.constant 0 : i32
    return %c0_i32, %arg1 : i32, i32
  }
  func.func @transform_2(%arg0: i32, %arg1: i32) -> (i32, i32) {
    %c0_i32 = arith.constant 0 : i32
    return %arg0, %arg1 : i32, i32
  }
}

module attributes {stable_mosaic.version = 11 : i64} {
  func.func @kernel(%arg0: i32, %arg1: i32, %arg2: memref<8x256xf32, #tpu.memory_space<vmem>>, %arg3: memref<256x128xf32, #tpu.memory_space<vmem>>, %arg4: memref<8x128xf32, #tpu.memory_space<vmem>>) attributes {dimension_semantics = [#tpu.dimension_semantics<parallel>, #tpu.dimension_semantics<parallel>], iteration_bounds = array<i64: 1, 1>, scalar_prefetch = 0 : i64, scratch_operands = 0 : i64, tpu.core_type = #tpu.core_type<tc>, window_params = [{transform_indices = @transform_0, window_bounds = array<i64: 8, 256>}, {transform_indices = @transform_1, window_bounds = array<i64: 256, 128>}, {transform_indices = @transform_2, window_bounds = array<i64: 8, 128>}]} {
    %c0 = arith.constant 0 : index
    %c0_0 = arith.constant 0 : index
    %0 = vector.load %arg2[%c0, %c0_0] : memref<8x256xf32, #tpu.memory_space<vmem>>, vector<8x256xf32>
    %c0_1 = arith.constant 0 : index
    %c0_2 = arith.constant 0 : index
    %1 = vector.load %arg3[%c0_1, %c0_2] : memref<256x128xf32, #tpu.memory_space<vmem>>, vector<256x128xf32>
    %cst = arith.constant dense<0.000000e+00> : vector<8x128xf32>
    %2 = tpu.matmul %0, %1, %cst {dimension_numbers = #tpu.dot_dimension_numbers<[1], [0], [0], [1], [0, 0, 1, 1], [], []>} : vector<8x256xf32>, vector<256x128xf32>, vector<8x128xf32> -> vector<8x128xf32>
    %3 = arith.mulf %0, %0 : vector<8x256xf32>
    %cst_3 = arith.constant dense<0.000000e+00> : vector<8xf32>
    %4 = vector.multi_reduction <add>, %3, %cst_3 [1] : vector<8x256xf32> to vector<8xf32>
    %5 = vector.shape_cast %4 : vector<8xf32> to vector<8x1xf32>
    %cst_4 = arith.constant 1.000000e-24 : f32
    %6 = vector.broadcast %cst_4 : f32 to vector<8x1xf32>
    %7 = arith.maximumf %5, %6 : vector<8x1xf32>
    %8 = math.rsqrt %7 : vector<8x1xf32>
    %cst_5 = arith.constant 2.000000e+01 : f32
    %9 = vector.broadcast %cst_5 : f32 to vector<8x1xf32>
    %10 = arith.mulf %8, %9 : vector<8x1xf32>
    %11 = vector.broadcast %10 : vector<8x1xf32> to vector<8x128xf32>
    %12 = arith.mulf %2, %11 : vector<8x128xf32>
    %c0_6 = arith.constant 0 : index
    %c0_7 = arith.constant 0 : index
    %13 = vector.load %arg4[%c0_6, %c0_7] : memref<8x128xf32, #tpu.memory_space<vmem>>, vector<8x128xf32>
    tpu.vector_store %arg4[%c0_6, %c0_7], %12 {strides = array<i32>} : memref<8x128xf32, #tpu.memory_space<vmem>>, vector<8x128xf32>,
    return
  }
  func.func @transform_0(%arg0: i32, %arg1: i32) -> (i32, i32) {
    %c0_i32 = arith.constant 0 : i32
    %c0_i32_0 = arith.constant 0 : i32
    return %arg0, %c0_i32 : i32, i32
  }
  func.func @transform_1(%arg0: i32, %arg1: i32) -> (i32, i32) {
    %c0_i32 = arith.constant 0 : i32
    %c0_i32_0 = arith.constant 0 : i32
    return %c0_i32, %arg1 : i32, i32
  }
  func.func @transform_2(%arg0: i32, %arg1: i32) -> (i32, i32) {
    %c0_i32 = arith.constant 0 : i32
    return %arg0, %arg1 : i32, i32
  }
}

</mosaic_0001>

<llo_original>
// kernel: tpu_custom_call.1
$region0: #{tpu_custom_call.1}
  #allocation0 [shape = 'u32[]', space=smem, size = 0x4, offset = 0x4, fixed_abs, tag = 'smem constant byte address 0x4 - core index']
  #allocation1 [shape = 'u32[72,128]{1,0:T(1,128)}', space=vmem, size = 0x9000, scoped, tag = 'internal scratch']
  %s0 = inlined_call_operand.hbm [shape: f32[8,256], index: 0, kind: input, shape index: {}]
  %s1 = inlined_call_operand.hbm [shape: f32[256,128], index: 1, kind: input, shape index: {}]
  %s2 = inlined_call_operand.hbm [shape: f32[8,128], index: 2, kind: output, shape index: {}]
  %s3 = sld [smem:[#allocation0]]
  $region26: #{tpu_custom_call.1} parent=0
    _
  %s5 = ssub.s32 1, %s3
  %s6 = scalar_select 0, %s5, %s3
  $region1: #{tpu_custom_call.1} parent=0
    #allocation2 [shape = 'u8[8192]{0}', space=vmem, size = 0x2000, scoped, tag = 'input window, operand 0, single buffered']
    #allocation3 [shape = 's32[1]{0}', space=sflag, size = 0x4, scoped, tag = 'scoped memory for tpu_custom_call.1']
    #allocation4 [shape = 's32[1]{0}', space=sflag, size = 0x4, scoped, tag = 'scoped memory for tpu_custom_call.1']
    #allocation5 [shape = 'u8[131072]{0}', space=vmem, size = 0x20000, scoped, tag = 'input window, operand 1, single buffered']
    #allocation6 [shape = 's32[1]{0}', space=sflag, size = 0x4, scoped, tag = 'scoped memory for tpu_custom_call.1']
    #allocation7 [shape = 'u8[4096]{0}', space=vmem, size = 0x1000, scoped, tag = 'output window, operand 0, single buffered']
    %7 = vsyncpa [#allocation3], 0
    %8 = vsyncpa [#allocation6], 0
    %9 = vsyncpa [#allocation4], 0
    // Predicated region
    $region2: #{tpu_custom_call.1} parent=1 // pred_check
      _
    $region3: #{tpu_custom_call.1} parent=1 // pred_check_branch
      %11 = sbr.rel (0) target = $region5
    $region4: #{tpu_custom_call.1} parent=1 // pred_region
      %13 = vsyncadd [#allocation3], 0
      %s15 = sshll.u32 %s0, 4
      %s16 = int_to_ptr.hbm [resolvable:$true] %s15
      %s17 = sshll.u32 [#allocation2], 4
      %s18 = int_to_ptr.vmem [resolvable:$true] %s17
      %20 = dma.hbm_to_vmem [thread:$0]  %s16, 256, %s18, [#allocation3]
    $region5: #{tpu_custom_call.1} parent=1 // pred_fallthru
      _
    // Predicated region
    $region6: #{tpu_custom_call.1} parent=1 // pred_check
      _
    $region7: #{tpu_custom_call.1} parent=1 // pred_check_branch
      %22 = sbr.rel (0) target = $region9
    $region8: #{tpu_custom_call.1} parent=1 // pred_region
      %24 = vsyncadd [#allocation6], 0
      %s25 = sshll.u32 %s1, 4
      %s26 = int_to_ptr.hbm [resolvable:$true] %s25
      %s27 = sshll.u32 [#allocation5], 4
      %s28 = int_to_ptr.vmem [resolvable:$true] %s27
      %33 = dma.hbm_to_vmem [thread:$0]  %s26, 4096, %s28, [#allocation6], 128, 128, 8
    $region9: #{tpu_custom_call.1} parent=1 // pred_fallthru
      _
    // Predicated region
    $region10: #{tpu_custom_call.1} parent=1 // pred_check
      _
    $region11: #{tpu_custom_call.1} parent=1 // pred_check_branch
      %35 = sbr.rel (0) target = $region13
    $region12: #{tpu_custom_call.1} parent=1 // pred_region
      %37 = dma.done [#allocation3], 256
    $region13: #{tpu_custom_call.1} parent=1 // pred_fallthru
      _
    // Predicated region
    $region14: #{tpu_custom_call.1} parent=1 // pred_check
      _
    $region15: #{tpu_custom_call.1} parent=1 // pred_check_branch
      %39 = sbr.rel (0) target = $region17
    $region16: #{tpu_custom_call.1} parent=1 // pred_region
      %41 = dma.done [#allocation6], 4096
    $region17: #{tpu_custom_call.1} parent=1 // pred_fallthru
      _
    %v42 = vld [vmem:[#allocation2] sm:$0xff]
    %v43 = vld [vmem:[#allocation2 + $0x8] sm:$0xff]
    %v44 = vld [vmem:[#allocation5] sm:$0xff]
    %v45 = vld [vmem:[#allocation5 + $0x8] sm:$0xff]
    %v46 = vld [vmem:[#allocation5 + $0x10] sm:$0xff]
    %v47 = vld [vmem:[#allocation5 + $0x18] sm:$0xff]
    %v48 = vld [vmem:[#allocation5 + $0x20] sm:$0xff]
    %v49 = vld [vmem:[#allocation5 + $0x28] sm:$0xff]
    %v50 = vld [vmem:[#allocation5 + $0x30] sm:$0xff]
    %v51 = vld [vmem:[#allocation5 + $0x38] sm:$0xff]
    %v52 = vld [vmem:[#allocation5 + $0x40] sm:$0xff]
    %v53 = vld [vmem:[#allocation5 + $0x48] sm:$0xff]
    %v54 = vld [vmem:[#allocation5 + $0x50] sm:$0xff]
    %v55 = vld [vmem:[#allocation5 + $0x58] sm:$0xff]
    %v56 = vld [vmem:[#allocation5 + $0x60] sm:$0xff]
    %v57 = vld [vmem:[#allocation5 + $0x68] sm:$0xff]
    %v58 = vld [vmem:[#allocation5 + $0x70] sm:$0xff]
    %v59 = vld [vmem:[#allocation5 + $0x78] sm:$0xff]
    %v60 = vld [vmem:[#allocation5 + $0x80] sm:$0xff]
    %v61 = vld [vmem:[#allocation5 + $0x88] sm:$0xff]
    %v62 = vld [vmem:[#allocation5 + $0x90] sm:$0xff]
    %v63 = vld [vmem:[#allocation5 + $0x98] sm:$0xff]
    %v64 = vld [vmem:[#allocation5 + $0xa0] sm:$0xff]
    %v65 = vld [vmem:[#allocation5 + $0xa8] sm:$0xff]
    %v66 = vld [vmem:[#allocation5 + $0xb0] sm:$0xff]
    %v67 = vld [vmem:[#allocation5 + $0xb8] sm:$0xff]
    %v68 = vld [vmem:[#allocation5 + $0xc0] sm:$0xff]
    %v69 = vld [vmem:[#allocation5 + $0xc8] sm:$0xff]
    %v70 = vld [vmem:[#allocation5 + $0xd0] sm:$0xff]
    %v71 = vld [vmem:[#allocation5 + $0xd8] sm:$0xff]
    %v72 = vld [vmem:[#allocation5 + $0xe0] sm:$0xff]
    %v73 = vld [vmem:[#allocation5 + $0xe8] sm:$0xff]
    %v74 = vld [vmem:[#allocation5 + $0xf0] sm:$0xff]
    %v75 = vld [vmem:[#allocation5 + $0xf8] sm:$0xff]
    %76 = vmatpush.msra.mxu0 %v59
    %77 = vmatpush.msra.mxu0 %v58
    %78 = vmatpush.msra.mxu0 %v57
    %79 = vmatpush.msra.mxu0 %v56
    %80 = vmatpush.msra.mxu0 %v55
    %81 = vmatpush.msra.mxu0 %v54
    %82 = vmatpush.msra.mxu0 %v53
    %83 = vmatpush.msra.mxu0 %v52
    %84 = vmatpush.msra.mxu0 %v51
    %85 = vmatpush.msra.mxu0 %v50
    %86 = vmatpush.msra.mxu0 %v49
    %87 = vmatpush.msra.mxu0 %v48
    %88 = vmatpush.msra.mxu0 %v47
    %89 = vmatpush.msra.mxu0 %v46
    %90 = vmatpush.msra.mxu0 %v45
    %91 = vmatpush.msra.mxu0 %v44
    %92 = vmatmul.f32.gmra.mxu0 %v42
    %v93 = vpop.f32.mrf.mxu0
    %v94 = vadd.f32 0.0, %v93
    %95 = vdwg.mxu0
    %96 = vmatpush.msra.mxu0 %v75
    %97 = vmatpush.msra.mxu0 %v74
    %98 = vmatpush.msra.mxu0 %v73
    %99 = vmatpush.msra.mxu0 %v72
    %100 = vmatpush.msra.mxu0 %v71
    %101 = vmatpush.msra.mxu0 %v70
    %102 = vmatpush.msra.mxu0 %v69
    %103 = vmatpush.msra.mxu0 %v68
    %104 = vmatpush.msra.mxu0 %v67
    %105 = vmatpush.msra.mxu0 %v66
    %106 = vmatpush.msra.mxu0 %v65
    %107 = vmatpush.msra.mxu0 %v64
    %108 = vmatpush.msra.mxu0 %v63
    %109 = vmatpush.msra.mxu0 %v62
    %110 = vmatpush.msra.mxu0 %v61
    %111 = vmatpush.msra.mxu0 %v60
    %112 = vmatmul.f32.gmra.mxu0 %v43
    %v113 = vpop.f32.mrf.mxu0
    %v114 = vadd.f32 %v94, %v113
    %115 = vdwg.mxu0
    %v116 = vmul.f32 %v42, %v42
    %v117 = vmul.f32 %v43, %v43
    %v118 = vadd.f32 %v116, %v117
    %119 = vadd.xlane.f32.xlu0 %v118
    %v120 = vpop.xlane.xlu0 %119
    %v121 = vmax.f32 %v120, 1e-24
    %v122 = vrsqrt.pop %v121
    %v123 = vmul.f32 %v122, %v121
    %v124 = vmul.f32 %v123, %v122
    %v125 = vmul.f32 0.5, %v124
    %v126 = vsub.f32 1.5, %v125
    %v127 = vmul.f32 %v122, %v126
    %vm128 = vweird.f32 %v121
    %vm129 = vweird.f32 %v122
    %vm130 = vmor %vm128, %vm129
    %v131 = vsel %vm130, %v122, %v127
    %v132 = vmul.f32 %v131, 20.0
    %v133 = vmul.f32 %v114, %v132
    %134 = vst [vmem:[#allocation7] sm:$0xff] %v133
    // Predicated region
    $region18: #{tpu_custom_call.1} parent=1 // pred_check
      _
    $region19: #{tpu_custom_call.1} parent=1 // pred_check_branch
      %136 = sbr.rel (0) target = $region21
    $region20: #{tpu_custom_call.1} parent=1 // pred_region
      %138 = vsyncadd [#allocation4], 0
      %s140 = sshll.u32 [#allocation7], 4
      %s141 = int_to_ptr.vmem [resolvable:$true] %s140
      %s142 = sshll.u32 %s2, 4
      %s143 = int_to_ptr.hbm [resolvable:$true] %s142
      %145 = dma.vmem_to_hbm [thread:$0]  %s141, 128, %s143, [#allocation4]
    $region21: #{tpu_custom_call.1} parent=1 // pred_fallthru
      _
    // Predicated region
    $region22: #{tpu_custom_call.1} parent=1 // pred_check
      _
    $region23: #{tpu_custom_call.1} parent=1 // pred_check_branch
      %147 = sbr.rel (0) target = $region25
    $region24: #{tpu_custom_call.1} parent=1 // pred_region
      %149 = dma.done [#allocation4], 128
    $region25: #{tpu_custom_call.1} parent=1 // pred_fallthru
      _
    %150 = vsyncpa [#allocation3], 1
    %151 = vsyncpa [#allocation6], 1
    %152 = vsyncpa [#allocation4], 1

// kernel: tpu_custom_call.1
$region0: #{tpu_custom_call.1}
  #allocation0 [shape = 'u32[]', space=smem, size = 0x4, offset = 0x4, fixed_abs, tag = 'smem constant byte address 0x4 - core index']
  #allocation1 [shape = 'u32[72,128]{1,0:T(1,128)}', space=vmem, size = 0x9000, scoped, tag = 'internal scratch']
  %s0 = inlined_call_operand.hbm [shape: f32[8,256], index: 0, kind: input, shape index: {}]
  %s1 = inlined_call_operand.hbm [shape: f32[256,128], index: 1, kind: input, shape index: {}]
  %s2 = inlined_call_operand.hbm [shape: f32[8,128], index: 2, kind: output, shape index: {}]
  %s3 = sld [smem:[#allocation0]]
  $region26: #{tpu_custom_call.1} parent=0
    _
  %s5 = ssub.s32 1, %s3
  %s6 = scalar_select 0, %s5, %s3
  $region1: #{tpu_custom_call.1} parent=0
    #allocation2 [shape = 'u8[8192]{0}', space=vmem, size = 0x2000, scoped, tag = 'input window, operand 0, single buffered']
    #allocation3 [shape = 's32[1]{0}', space=sflag, size = 0x4, scoped, tag = 'scoped memory for tpu_custom_call.1']
    #allocation4 [shape = 's32[1]{0}', space=sflag, size = 0x4, scoped, tag = 'scoped memory for tpu_custom_call.1']
    #allocation5 [shape = 'u8[131072]{0}', space=vmem, size = 0x20000, scoped, tag = 'input window, operand 1, single buffered']
    #allocation6 [shape = 's32[1]{0}', space=sflag, size = 0x4, scoped, tag = 'scoped memory for tpu_custom_call.1']
    #allocation7 [shape = 'u8[4096]{0}', space=vmem, size = 0x1000, scoped, tag = 'output window, operand 0, single buffered']
    %7 = vsyncpa [#allocation3], 0
    %8 = vsyncpa [#allocation6], 0
    %9 = vsyncpa [#allocation4], 0
    // Predicated region
    $region2: #{tpu_custom_call.1} parent=1 // pred_check
      _
    $region3: #{tpu_custom_call.1} parent=1 // pred_check_branch
      %11 = sbr.rel (0) target = $region5
    $region4: #{tpu_custom_call.1} parent=1 // pred_region
      %13 = vsyncadd [#allocation3], 0
      %s15 = sshll.u32 %s0, 4
      %s16 = int_to_ptr.hbm [resolvable:$true] %s15
      %s17 = sshll.u32 [#allocation2], 4
      %s18 = int_to_ptr.vmem [resolvable:$true] %s17
      %20 = dma.hbm_to_vmem [thread:$0]  %s16, 256, %s18, [#allocation3]
    $region5: #{tpu_custom_call.1} parent=1 // pred_fallthru
      _
    // Predicated region
    $region6: #{tpu_custom_call.1} parent=1 // pred_check
      _
    $region7: #{tpu_custom_call.1} parent=1 // pred_check_branch
      %22 = sbr.rel (0) target = $region9
    $region8: #{tpu_custom_call.1} parent=1 // pred_region
      %24 = vsyncadd [#allocation6], 0
      %s25 = sshll.u32 %s1, 4
      %s26 = int_to_ptr.hbm [resolvable:$true] %s25
      %s27 = sshll.u32 [#allocation5], 4
      %s28 = int_to_ptr.vmem [resolvable:$true] %s27
      %33 = dma.hbm_to_vmem [thread:$0]  %s26, 4096, %s28, [#allocation6], 128, 128, 8
    $region9: #{tpu_custom_call.1} parent=1 // pred_fallthru
      _
    // Predicated region
    $region10: #{tpu_custom_call.1} parent=1 // pred_check
      _
    $region11: #{tpu_custom_call.1} parent=1 // pred_check_branch
      %35 = sbr.rel (0) target = $region13
    $region12: #{tpu_custom_call.1} parent=1 // pred_region
      %37 = dma.done [#allocation3], 256
    $region13: #{tpu_custom_call.1} parent=1 // pred_fallthru
      _
    // Predicated region
    $region14: #{tpu_custom_call.1} parent=1 // pred_check
      _
    $region15: #{tpu_custom_call.1} parent=1 // pred_check_branch
      %39 = sbr.rel (0) target = $region17
    $region16: #{tpu_custom_call.1} parent=1 // pred_region
      %41 = dma.done [#allocation6], 4096
    $region17: #{tpu_custom_call.1} parent=1 // pred_fallthru
      _
    %v42 = vld [vmem:[#allocation2] sm:$0xff]
    %v43 = vld [vmem:[#allocation2 + $0x8] sm:$0xff]
    %v44 = vld [vmem:[#allocation5] sm:$0xff]
    %v45 = vld [vmem:[#allocation5 + $0x8] sm:$0xff]
    %v46 = vld [vmem:[#allocation5 + $0x10] sm:$0xff]
    %v47 = vld [vmem:[#allocation5 + $0x18] sm:$0xff]
    %v48 = vld [vmem:[#allocation5 + $0x20] sm:$0xff]
    %v49 = vld [vmem:[#allocation5 + $0x28] sm:$0xff]
    %v50 = vld [vmem:[#allocation5 + $0x30] sm:$0xff]
    %v51 = vld [vmem:[#allocation5 + $0x38] sm:$0xff]
    %v52 = vld [vmem:[#allocation5 + $0x40] sm:$0xff]
    %v53 = vld [vmem:[#allocation5 + $0x48] sm:$0xff]
    %v54 = vld [vmem:[#allocation5 + $0x50] sm:$0xff]
    %v55 = vld [vmem:[#allocation5 + $0x58] sm:$0xff]
    %v56 = vld [vmem:[#allocation5 + $0x60] sm:$0xff]
    %v57 = vld [vmem:[#allocation5 + $0x68] sm:$0xff]
    %v58 = vld [vmem:[#allocation5 + $0x70] sm:$0xff]
    %v59 = vld [vmem:[#allocation5 + $0x78] sm:$0xff]
    %v60 = vld [vmem:[#allocation5 + $0x80] sm:$0xff]
    %v61 = vld [vmem:[#allocation5 + $0x88] sm:$0xff]
    %v62 = vld [vmem:[#allocation5 + $0x90] sm:$0xff]
    %v63 = vld [vmem:[#allocation5 + $0x98] sm:$0xff]
    %v64 = vld [vmem:[#allocation5 + $0xa0] sm:$0xff]
    %v65 = vld [vmem:[#allocation5 + $0xa8] sm:$0xff]
    %v66 = vld [vmem:[#allocation5 + $0xb0] sm:$0xff]
    %v67 = vld [vmem:[#allocation5 + $0xb8] sm:$0xff]
    %v68 = vld [vmem:[#allocation5 + $0xc0] sm:$0xff]
    %v69 = vld [vmem:[#allocation5 + $0xc8] sm:$0xff]
    %v70 = vld [vmem:[#allocation5 + $0xd0] sm:$0xff]
    %v71 = vld [vmem:[#allocation5 + $0xd8] sm:$0xff]
    %v72 = vld [vmem:[#allocation5 + $0xe0] sm:$0xff]
    %v73 = vld [vmem:[#allocation5 + $0xe8] sm:$0xff]
    %v74 = vld [vmem:[#allocation5 + $0xf0] sm:$0xff]
    %v75 = vld [vmem:[#allocation5 + $0xf8] sm:$0xff]
    %76 = vmatpush.msra.mxu0 %v59
    %77 = vmatpush.msra.mxu0 %v58
    %78 = vmatpush.msra.mxu0 %v57
    %79 = vmatpush.msra.mxu0 %v56
    %80 = vmatpush.msra.mxu0 %v55
    %81 = vmatpush.msra.mxu0 %v54
    %82 = vmatpush.msra.mxu0 %v53
    %83 = vmatpush.msra.mxu0 %v52
    %84 = vmatpush.msra.mxu0 %v51
    %85 = vmatpush.msra.mxu0 %v50
    %86 = vmatpush.msra.mxu0 %v49
    %87 = vmatpush.msra.mxu0 %v48
    %88 = vmatpush.msra.mxu0 %v47
    %89 = vmatpush.msra.mxu0 %v46
    %90 = vmatpush.msra.mxu0 %v45
    %91 = vmatpush.msra.mxu0 %v44
    %92 = vmatmul.f32.gmra.mxu0 %v42
    %v93 = vpop.f32.mrf.mxu0
    %v94 = vadd.f32 0.0, %v93
    %95 = vdwg.mxu0
    %96 = vmatpush.msra.mxu0 %v75
    %97 = vmatpush.msra.mxu0 %v74
    %98 = vmatpush.msra.mxu0 %v73
    %99 = vmatpush.msra.mxu0 %v72
    %100 = vmatpush.msra.mxu0 %v71
    %101 = vmatpush.msra.mxu0 %v70
    %102 = vmatpush.msra.mxu0 %v69
    %103 = vmatpush.msra.mxu0 %v68
    %104 = vmatpush.msra.mxu0 %v67
    %105 = vmatpush.msra.mxu0 %v66
    %106 = vmatpush.msra.mxu0 %v65
    %107 = vmatpush.msra.mxu0 %v64
    %108 = vmatpush.msra.mxu0 %v63
    %109 = vmatpush.msra.mxu0 %v62
    %110 = vmatpush.msra.mxu0 %v61
    %111 = vmatpush.msra.mxu0 %v60
    %112 = vmatmul.f32.gmra.mxu0 %v43
    %v113 = vpop.f32.mrf.mxu0
    %v114 = vadd.f32 %v94, %v113
    %115 = vdwg.mxu0
    %v116 = vmul.f32 %v42, %v42
    %v117 = vmul.f32 %v43, %v43
    %v118 = vadd.f32 %v116, %v117
    %119 = vadd.xlane.f32.xlu0 %v118
    %v120 = vpop.xlane.xlu0 %119
    %v121 = vmax.f32 %v120, 1e-24
    %v122 = vrsqrt.pop %v121
    %v123 = vmul.f32 %v122, %v121
    %v124 = vmul.f32 %v123, %v122
    %v125 = vmul.f32 0.5, %v124
    %v126 = vsub.f32 1.5, %v125
    %v127 = vmul.f32 %v122, %v126
    %vm128 = vweird.f32 %v121
    %vm129 = vweird.f32 %v122
    %vm130 = vmor %vm128, %vm129
    %v131 = vsel %vm130, %v122, %v127
    %v132 = vmul.f32 %v131, 20.0
    %v133 = vmul.f32 %v114, %v132
    %134 = vst [vmem:[#allocation7] sm:$0xff] %v133
    // Predicated region
    $region18: #{tpu_custom_call.1} parent=1 // pred_check
      _
    $region19: #{tpu_custom_call.1} parent=1 // pred_check_branch
      %136 = sbr.rel (0) target = $region21
    $region20: #{tpu_custom_call.1} parent=1 // pred_region
      %138 = vsyncadd [#allocation4], 0
      %s140 = sshll.u32 [#allocation7], 4
      %s141 = int_to_ptr.vmem [resolvable:$true] %s140
      %s142 = sshll.u32 %s2, 4
      %s143 = int_to_ptr.hbm [resolvable:$true] %s142
      %145 = dma.vmem_to_hbm [thread:$0]  %s141, 128, %s143, [#allocation4]
    $region21: #{tpu_custom_call.1} parent=1 // pred_fallthru
      _
    // Predicated region
    $region22: #{tpu_custom_call.1} parent=1 // pred_check
      _
    $region23: #{tpu_custom_call.1} parent=1 // pred_check_branch
      %147 = sbr.rel (0) target = $region25
    $region24: #{tpu_custom_call.1} parent=1 // pred_region
      %149 = dma.done [#allocation4], 128
    $region25: #{tpu_custom_call.1} parent=1 // pred_fallthru
      _
    %150 = vsyncpa [#allocation3], 1
    %151 = vsyncpa [#allocation6], 1
    %152 = vsyncpa [#allocation4], 1

</llo_original>
